<compile_context>
chip_gen: v6e
topology: v6e:2x2x1
jax: 0.10.0
libtpu: 0.0.40
codegen_flags: <defaults>
</compile_context>

<pallas_src>
import math
import functools

import jax
import jax.numpy as jnp
from jax.experimental import pallas as pl
from jax.experimental.pallas import tpu as pltpu


# ----------------------------- fused user-MLP kernel -----------------------------

def _fused_user_mlp_kernel(te_ref, we_ref, be_ref, xu_ref, *rest, n_layers):
    # rest = [w0, b0, w1, b1, ..., user_ref, hcat_out_ref]
    layer_refs = rest[: 2 * n_layers]
    ue_ref = rest[2 * n_layers]
    hcat_ref = rest[2 * n_layers + 1]

    # emb = time_emb @ We + be
    emb = jnp.dot(te_ref[...], we_ref[...], preferred_element_type=jnp.float32) + be_ref[...]

    # First in_layers2 layer on concat([x_U, emb]) — implemented by splitting the
    # weight rows so no lane-dim concat of the activations is needed:
    #   tanh(x_U @ W[:d_xu] + emb @ W[d_xu:] + b)
    w0 = layer_refs[0]
    b0 = layer_refs[1]
    d_xu = xu_ref.shape[1]          # multiple of 8 (padded in the wrapper)
    h = jnp.dot(xu_ref[...], w0[0:d_xu, :], preferred_element_type=jnp.float32)
    h = h + jnp.dot(emb, w0[d_xu:, :], preferred_element_type=jnp.float32)
    h = jnp.tanh(h + b0[...])

    # Remaining in_layers2 layers.
    for li in range(1, n_layers):
        w = layer_refs[2 * li][...]
        b = layer_refs[2 * li + 1][...]
        h = jnp.tanh(jnp.dot(h, w, preferred_element_type=jnp.float32) + b)

    # Pre-normalized user slab: [h_U, h_U, user_emb] / ||.||  (rsqrt hoisted here,
    # so the item-tiled sim kernel only does matmul + one broadcast scale).
    ue = ue_ref[...].astype(jnp.float32)
    sumsq = (2.0 * jnp.sum(h * h, axis=1, keepdims=True)
             + jnp.sum(ue * ue, axis=1, keepdims=True))
    inv = jax.lax.rsqrt(sumsq)
    u = jnp.concatenate([h, h, ue], axis=1) * inv
    hcat_ref[...] = u.astype(hcat_ref.dtype)


def fused_user_mlp(time_emb, x_U, user_emb, emb_layer, in_layers2):
    """One pallas_call: emb_layer -> in_layers2 tanh chain -> normalized [h_U, h_U, user]."""
    B = time_emb.shape[0]
    n_layers = len(in_layers2)
    assert n_layers >= 1
    in_layers2 = list(in_layers2)

    # Guard: the w0 row split must land on an 8-aligned sublane boundary.
    d_xu = x_U.shape[1]
    pad = (-d_xu) % 8
    if pad:
        x_U = jnp.pad(x_U, ((0, 0), (0, pad)))
        w0, b0 = in_layers2[0]
        w0 = jnp.concatenate(
            [w0[:d_xu], jnp.zeros((pad, w0.shape[1]), w0.dtype), w0[d_xu:]], axis=0)
        in_layers2[0] = (w0, b0)

    D = in_layers2[-1][0].shape[1]
    Du = user_emb.shape[1]
    M_out = 2 * D + Du

    we, be = emb_layer
    args = [time_emb, we, be, x_U]
    for w, b in in_layers2:
        args += [w, b]
    args.append(user_emb)

    zero2 = lambda i: (0, 0)
    kernel = functools.partial(_fused_user_mlp_kernel, n_layers=n_layers)
    return pl.pallas_call(
        kernel,
        out_shape=jax.ShapeDtypeStruct((B, M_out), jnp.float32),
        grid=(1,),
        in_specs=[pl.BlockSpec(a.shape, zero2) for a in args],
        out_specs=pl.BlockSpec((B, M_out), zero2),
    )(*args)


# ----------------------------- item-table preparation (once per model) -----------------------------

def _round_up(n, m):
    return pl.cdiv(n, m) * m


def _tpu_tuning():
    """Generation-aware tile/VMEM knobs for the item-tiled sim kernel."""
    kind = ""
    try:
        kind = jax.devices()[0].device_kind.lower()
    except Exception:
        pass
    if "v5p" in kind:
        return dict(vmem_budget=48 << 20, tn_max=2048, min_steps=1)
    if "v5" in kind:     # v5e: 16 MiB default scoped VMEM, lowest HBM BW
        return dict(vmem_budget=12 << 20, tn_max=1024, min_steps=1)
    if "v6" in kind:     # v6e: 128 MiB physical VMEM — go big
        return dict(vmem_budget=48 << 20, tn_max=2048, min_steps=1)
    # v7x (or unknown): 64 MiB physical VMEM, 2 TensorCores -> keep >= 4 grid steps.
    return dict(vmem_budget=40 << 20, tn_max=2048, min_steps=4)


def _choose_item_tile(N, M, B, item_itemsize, tn_max, vmem_budget, min_steps):
    """Largest 128-multiple tile <= tn_max whose double-buffered footprint fits the
    budget; then shrink (if needed) so the item grid has >= min_steps steps."""
    tn = max(128, min(tn_max, _round_up(N, 128)))

    def fits(t):
        need = (2 * t * M * item_itemsize   # double-buffered item tiles
                + 2 * B * t * 4             # double-buffered output tiles
                + B * M * 4                 # resident (normalized) user slab
                + 2 * t * 4)                # double-buffered inverse-norm rows
        return need <= vmem_budget

    while tn > 128 and not fits(tn):
        tn -= 128
    while tn > 128 and pl.cdiv(N, tn) < min_steps:   # v7x megacore balance
        tn -= 128
    return tn


def prepare_item_table(item_emb, *, item_dtype=jnp.bfloat16, batch_hint=64):
    """One-time (model-load) prep: cast + pad the item table, cache f32 inverse norms.

    item_dtype=bf16 halves the dominant HBM stream (MXU takes bf16 natively with
    f32 accumulation); pass jnp.float32 for bit-tight scores.
    """
    N, M = item_emb.shape
    tune = _tpu_tuning()
    itemsize = jnp.dtype(item_dtype).itemsize
    tn = _choose_item_tile(N, M, batch_hint, itemsize,
                           tune["tn_max"], tune["vmem_budget"], tune["min_steps"])
    Np = _round_up(N, tn)

    item_f32 = item_emb.astype(jnp.float32)
    sumsq = jnp.sum(item_f32 * item_f32, axis=1)
    inv = jnp.where(sumsq > 0, jax.lax.rsqrt(sumsq), 0.0)   # padded rows -> 0, never NaN

    table = item_emb.astype(item_dtype)
    if Np != N:
        table = jnp.pad(table, ((0, Np - N), (0, 0)))
        inv = jnp.pad(inv, (0, Np - N))

    return dict(
        table=table,
        inv_row=inv.reshape(1, Np).astype(jnp.float32),
        tn=int(tn),
        n_items=int(N),
        vmem_limit=int(tune["vmem_budget"] + (4 << 20)),
    )


# ----------------------------- cosine-similarity kernel -----------------------------

def _sim_kernel(u_ref, it_ref, inv_ref, o_ref):
    # u: [B, M] pre-normalized user slab (resident across item tiles);
    # it: [tn, M] streamed item tile; inv: [1, tn] cached f32 inverse item norms;
    # o: [B, tn] lane-dense output tile.
    it = it_ref[...]
    u = u_ref[...].astype(it.dtype)
    # QK^T pattern: contract the minor dims of both operands (no .T / no relayout).
    dot = jax.lax.dot_general(
        u, it, dimension_numbers=(((1,), (1,)), ((), ())),
        preferred_element_type=jnp.float32)
    o_ref[...] = (dot * inv_ref[...]).astype(o_ref.dtype)


def cosine_similarity(user_slab_normed, item_prep):
    """sim[b, n] = <u_b / ||u_b||, item_n> / ||item_n||, tiled over items.

    Single HBM pass over the (prepared, padded) item table per call.
    """
    B, M = user_slab_normed.shape
    table = item_prep["table"]
    inv_row = item_prep["inv_row"]
    tn = item_prep["tn"]
    N = item_prep["n_items"]
    Np = table.shape[0]

    out = pl.pallas_call(
        _sim_kernel,
        out_shape=jax.ShapeDtypeStruct((B, Np), jnp.float32),
        grid=(Np // tn,),
        in_specs=[
            pl.BlockSpec((B, M), lambda j: (0, 0)),    # normalized user slab, resident
            pl.BlockSpec((tn, M), lambda j: (j, 0)),   # stream item tiles
            pl.BlockSpec((1, tn), lambda j: (0, j)),   # stream cached inverse item norms
        ],
        out_specs=pl.BlockSpec((B, tn), lambda j: (0, j)),  # lane-dense output tiles
        compiler_params=pltpu.CompilerParams(
            dimension_semantics=("parallel",),
            vmem_limit_bytes=item_prep["vmem_limit"]),
    )(user_slab_normed, table, inv_row)

    return out[:, :N] if Np != N else out


# ----------------------------- plain-JAX glue -----------------------------

def timestep_embedding(timesteps, dim, max_period=10000):
    half = dim // 2
    freqs = jnp.exp(-math.log(max_period) * jnp.arange(half, dtype=jnp.float32) / half)
    args = timesteps[:, None].astype(jnp.float32) * freqs[None]
    emb = jnp.concatenate([jnp.cos(args), jnp.sin(args)], axis=-1)
    if dim % 2:
        emb = jnp.concatenate([emb, jnp.zeros_like(emb[:, :1])], axis=-1)
    return emb


def init_params(key, in_dims, emb_size, item_num, user_num):
    in_dims2 = list(in_dims)
    in_dims2[0] *= 2
    in_dims_temp = [in_dims[0] + emb_size] + list(in_dims[1:])
    in_dims_temp2 = [in_dims2[0] + emb_size] + list(in_dims2[1:])

    emb_user_dim = in_dims_temp[-1]
    emb_item_dim = in_dims_temp[-1] + emb_user_dim + in_dims_temp2[-1]

    params = {}
    keys = jax.random.split(key, 32)
    kidx = 0

    def normal(shape, std):
        nonlocal kidx
        k = keys[kidx]; kidx += 1
        return std * jax.random.normal(k, shape, dtype=jnp.float32)

    def make_linear(d_in, d_out):
        std = math.sqrt(2.0 / (d_in + d_out))
        # stored as [d_in, d_out] (transpose of torch [out, in]); biases pre-shaped (1, d_out)
        w = normal((d_in, d_out), std)
        b = normal((1, d_out), 0.001)
        return w, b

    params["emb_layer"] = make_linear(emb_size, emb_size)
    # in_layers / out_layers are dead code in forward() with RCloss=False -> not created.
    params["in_layers2"] = [make_linear(a, b) for a, b in zip(in_dims_temp2[:-1], in_dims_temp2[1:])]

    def xavier(shape):
        nonlocal kidx
        k = keys[kidx]; kidx += 1
        bound = math.sqrt(6.0 / (shape[0] + shape[1]))
        return jax.random.uniform(k, shape, jnp.float32, -bound, bound)

    params["embedding_item"] = xavier((item_num, emb_item_dim))
    params["embedding_user"] = xavier((user_num, emb_user_dim))
    return params


def forward(params, x, timesteps, x_U, index, emb_size, item_prep=None):
    del x  # only feeds the in_layers branch, which never reaches the output (RCloss=False)
    x_U = x_U.reshape(x_U.shape[0], -1)

    time_emb = timestep_embedding(timesteps, emb_size)          # tiny, plain JAX
    user_e = params["embedding_user"][index]                    # gather, plain JAX

    # One fused kernel: emb_layer + in_layers2 tanh chain + normalized [h_U, h_U, user].
    u_normed = fused_user_mlp(time_emb, x_U, user_e,
                              params["emb_layer"], params["in_layers2"])

    if item_prep is None:
        # TODO(synk): in a served model, prepare once at load time and reuse across calls.
        item_prep = prepare_item_table(params["embedding_item"],
                                       item_dtype=jnp.float32,
                                       batch_hint=x_U.shape[0])

    return cosine_similarity(u_normed, item_prep)


# ----------------------------- reference (pure jnp) -----------------------------

def forward_ref(params, x, timesteps, x_U, index, emb_size):
    del x
    x_U = x_U.reshape(x_U.shape[0], -1)
    time_emb = timestep_embedding(timesteps, emb_size)
    w, b = params["emb_layer"]
    emb = time_emb @ w + b
    h_U = jnp.concatenate([x_U, emb], axis=-1)
    for w, b in params["in_layers2"]:
        h_U = jnp.tanh(h_U @ w + b)
    user_e = params["embedding_user"][index]
    item_e = params["embedding_item"]
    u = jnp.concatenate([h_U, h_U, user_e], axis=1)
    un = jnp.linalg.norm(u, axis=1, keepdims=True)
    inorm = jnp.linalg.norm(item_e, axis=1)
    return (u @ item_e.T) / (un * inorm[None, :])


# ----------------------------- main -----------------------------

if __name__ == "__main__":
    B = 8
    in_dims = [64, 64, 32]      # two in_layers2 layers -> exercises the fused chain
    emb_size = 16
    item_num = 300              # not a multiple of 128 -> exercises padded-tile path
    user_num = 64

    key = jax.random.PRNGKey(0)
    k_p, k_x, k_xu, k_t, k_i = jax.random.split(key, 5)

    params = init_params(k_p, in_dims, emb_size, item_num, user_num)

    x = jax.random.normal(k_x, (B, in_dims[0]), dtype=jnp.float32)
    x_U = jax.random.normal(k_xu, (B, 2, in_dims[0]), dtype=jnp.float32)
    timesteps = jax.random.randint(k_t, (B,), 0, 1000)
    index = jax.random.randint(k_i, (B,), 0, user_num)

    ref = forward_ref(params, x, timesteps, x_U, index, emb_size)

    # f32 item table: bit-tight check.
    prep_f32 = prepare_item_table(params["embedding_item"],
                                  item_dtype=jnp.float32, batch_hint=B)
    out_f32 = forward(params, x, timesteps, x_U, index, emb_size, item_prep=prep_f32)
    out_f32 = jax.block_until_ready(out_f32)
    assert out_f32.shape == (B, item_num), out_f32.shape
    assert jnp.allclose(out_f32, ref, rtol=1e-4, atol=1e-4), \
        float(jnp.max(jnp.abs(out_f32 - ref)))

    # bf16 item table (production default: halves the dominant HBM stream) — looser tolerance.
    prep_bf16 = prepare_item_table(params["embedding_item"],
                                   item_dtype=jnp.bfloat16, batch_hint=B)
    out_bf16 = forward(params, x, timesteps, x_U, index, emb_size, item_prep=prep_bf16)
    out_bf16 = jax.block_until_ready(out_bf16)
    assert out_bf16.shape == (B, item_num), out_bf16.shape
    assert jnp.allclose(out_bf16, ref, rtol=3e-2, atol=3e-2), \
        float(jnp.max(jnp.abs(out_bf16 - ref)))

    print("KERNEL_OK")
</pallas_src>

<mosaic_0001>
module attributes {stable_mosaic.version = 11 : i64} {
  func.func @_fused_user_mlp_kernel(%arg0: i32, %arg1: memref<8x16xf32, #tpu.memory_space<vmem>>, %arg2: memref<16x16xf32, #tpu.memory_space<vmem>>, %arg3: memref<1x16xf32, #tpu.memory_space<vmem>>, %arg4: memref<8x128xf32, #tpu.memory_space<vmem>>, %arg5: memref<144x64xf32, #tpu.memory_space<vmem>>, %arg6: memref<1x64xf32, #tpu.memory_space<vmem>>, %arg7: memref<64x32xf32, #tpu.memory_space<vmem>>, %arg8: memref<1x32xf32, #tpu.memory_space<vmem>>, %arg9: memref<8x32xf32, #tpu.memory_space<vmem>>, %arg10: memref<8x96xf32, #tpu.memory_space<vmem>>) attributes {dimension_semantics = [#tpu.dimension_semantics<arbitrary>], iteration_bounds = array<i64: 1>, scalar_prefetch = 0 : i64, scratch_operands = 0 : i64, tpu.core_type = #tpu.core_type<tc>, window_params = [{pipeline_mode = #tpu.pipeline_mode<synchronous>, transform_indices = @transform_0, window_bounds = array<i64: 8, 16>}, {pipeline_mode = #tpu.pipeline_mode<synchronous>, transform_indices = @transform_1, window_bounds = array<i64: 16, 16>}, {pipeline_mode = #tpu.pipeline_mode<synchronous>, transform_indices = @transform_2, window_bounds = array<i64: 1, 16>}, {pipeline_mode = #tpu.pipeline_mode<synchronous>, transform_indices = @transform_3, window_bounds = array<i64: 8, 128>}, {pipeline_mode = #tpu.pipeline_mode<synchronous>, transform_indices = @transform_4, window_bounds = array<i64: 144, 64>}, {pipeline_mode = #tpu.pipeline_mode<synchronous>, transform_indices = @transform_5, window_bounds = array<i64: 1, 64>}, {pipeline_mode = #tpu.pipeline_mode<synchronous>, transform_indices = @transform_6, window_bounds = array<i64: 64, 32>}, {pipeline_mode = #tpu.pipeline_mode<synchronous>, transform_indices = @transform_7, window_bounds = array<i64: 1, 32>}, {pipeline_mode = #tpu.pipeline_mode<synchronous>, transform_indices = @transform_8, window_bounds = array<i64: 8, 32>}, {pipeline_mode = #tpu.pipeline_mode<synchronous>, transform_indices = @transform_9, window_bounds = array<i64: 8, 96>}]} {
    %c0 = arith.constant 0 : index
    %c0_0 = arith.constant 0 : index
    %0 = vector.load %arg1[%c0, %c0_0] : memref<8x16xf32, #tpu.memory_space<vmem>>, vector<8x16xf32>
    %c0_1 = arith.constant 0 : index
    %c0_2 = arith.constant 0 : index
    %1 = vector.load %arg2[%c0_1, %c0_2] : memref<16x16xf32, #tpu.memory_space<vmem>>, vector<16x16xf32>
    %cst = arith.constant dense<0.000000e+00> : vector<8x16xf32>
    %2 = tpu.matmul %0, %1, %cst {dimension_numbers = #tpu.dot_dimension_numbers<[1], [0], [0], [1], [0, 0, 1, 1], [], []>} : vector<8x16xf32>, vector<16x16xf32>, vector<8x16xf32> -> vector<8x16xf32>
    %c0_3 = arith.constant 0 : index
    %c0_4 = arith.constant 0 : index
    %3 = vector.load %arg3[%c0_3, %c0_4] : memref<1x16xf32, #tpu.memory_space<vmem>>, vector<1x16xf32>
    %4 = vector.broadcast %3 : vector<1x16xf32> to vector<8x16xf32>
    %5 = arith.addf %2, %4 : vector<8x16xf32>
    %c0_5 = arith.constant 0 : index
    %c0_6 = arith.constant 0 : index
    %6 = vector.load %arg4[%c0_5, %c0_6] : memref<8x128xf32, #tpu.memory_space<vmem>>, vector<8x128xf32>
    %c0_7 = arith.constant 0 : index
    %c0_8 = arith.constant 0 : index
    %7 = vector.load %arg5[%c0_7, %c0_8] : memref<144x64xf32, #tpu.memory_space<vmem>>, vector<128x64xf32>
    %cst_9 = arith.constant dense<0.000000e+00> : vector<8x64xf32>
    %8 = tpu.matmul %6, %7, %cst_9 {dimension_numbers = #tpu.dot_dimension_numbers<[1], [0], [0], [1], [0, 0, 1, 1], [], []>} : vector<8x128xf32>, vector<128x64xf32>, vector<8x64xf32> -> vector<8x64xf32>
    %c128 = arith.constant 128 : index
    %c0_10 = arith.constant 0 : index
    %9 = vector.load %arg5[%c128, %c0_10] : memref<144x64xf32, #tpu.memory_space<vmem>>, vector<16x64xf32>
    %cst_11 = arith.constant dense<0.000000e+00> : vector<8x64xf32>
    %10 = tpu.matmul %5, %9, %cst_11 {dimension_numbers = #tpu.dot_dimension_numbers<[1], [0], [0], [1], [0, 0, 1, 1], [], []>} : vector<8x16xf32>, vector<16x64xf32>, vector<8x64xf32> -> vector<8x64xf32>
    %11 = arith.addf %8, %10 : vector<8x64xf32>
    %c0_12 = arith.constant 0 : index
    %c0_13 = arith.constant 0 : index
    %12 = vector.load %arg6[%c0_12, %c0_13] : memref<1x64xf32, #tpu.memory_space<vmem>>, vector<1x64xf32>
    %13 = vector.broadcast %12 : vector<1x64xf32> to vector<8x64xf32>
    %14 = arith.addf %11, %13 : vector<8x64xf32>
    %15 = math.tanh %14 : vector<8x64xf32>
    %c0_14 = arith.constant 0 : index
    %c0_15 = arith.constant 0 : index
    %16 = vector.load %arg7[%c0_14, %c0_15] : memref<64x32xf32, #tpu.memory_space<vmem>>, vector<64x32xf32>
    %c0_16 = arith.constant 0 : index
    %c0_17 = arith.constant 0 : index
    %17 = vector.load %arg8[%c0_16, %c0_17] : memref<1x32xf32, #tpu.memory_space<vmem>>, vector<1x32xf32>
    %cst_18 = arith.constant dense<0.000000e+00> : vector<8x32xf32>
    %18 = tpu.matmul %15, %16, %cst_18 {dimension_numbers = #tpu.dot_dimension_numbers<[1], [0], [0], [1], [0, 0, 1, 1], [], []>} : vector<8x64xf32>, vector<64x32xf32>, vector<8x32xf32> -> vector<8x32xf32>
    %19 = vector.broadcast %17 : vector<1x32xf32> to vector<8x32xf32>
    %20 = arith.addf %18, %19 : vector<8x32xf32>
    %21 = math.tanh %20 : vector<8x32xf32>
    %c0_19 = arith.constant 0 : index
    %c0_20 = arith.constant 0 : index
    %22 = vector.load %arg9[%c0_19, %c0_20] : memref<8x32xf32, #tpu.memory_space<vmem>>, vector<8x32xf32>
    %23 = arith.mulf %21, %21 : vector<8x32xf32>
    %cst_21 = arith.constant dense<0.000000e+00> : vector<8xf32>
    %24 = vector.multi_reduction <add>, %23, %cst_21 [1] : vector<8x32xf32> to vector<8xf32>
    %25 = vector.shape_cast %24 : vector<8xf32> to vector<8x1xf32>
    %cst_22 = arith.constant 2.000000e+00 : f32
    %26 = vector.broadcast %cst_22 : f32 to vector<8x1xf32>
    %27 = arith.mulf %26, %25 : vector<8x1xf32>
    %28 = arith.mulf %22, %22 : vector<8x32xf32>
    %cst_23 = arith.constant dense<0.000000e+00> : vector<8xf32>
    %29 = vector.multi_reduction <add>, %28, %cst_23 [1] : vector<8x32xf32> to vector<8xf32>
    %30 = vector.shape_cast %29 : vector<8xf32> to vector<8x1xf32>
    %31 = arith.addf %27, %30 : vector<8x1xf32>
    %32 = math.rsqrt %31 : vector<8x1xf32>
    %33 = tpu.concatenate %21, %21, %22 in 1 : vector<8x32xf32>, vector<8x32xf32>, vector<8x32xf32> -> vector<8x96xf32>
    %34 = vector.broadcast %32 : vector<8x1xf32> to vector<8x96xf32>
    %35 = arith.mulf %33, %34 : vector<8x96xf32>
    %c0_24 = arith.constant 0 : index
    %c0_25 = arith.constant 0 : index
    %36 = vector.load %arg10[%c0_24, %c0_25] : memref<8x96xf32, #tpu.memory_space<vmem>>, vector<8x96xf32>
    tpu.vector_store %arg10[%c0_24, %c0_25], %35 {strides = array<i32>} : memref<8x96xf32, #tpu.memory_space<vmem>>, vector<8x96xf32>,
    return
  }
  func.func @transform_0(%arg0: i32) -> (i32, i32) {
    %c0_i32 = arith.constant 0 : i32
    %c0_i32_0 = arith.constant 0 : i32
    %c0_i32_1 = arith.constant 0 : i32
    return %c0_i32, %c0_i32_0 : i32, i32
  }
  func.func @transform_1(%arg0: i32) -> (i32, i32) {
    %c0_i32 = arith.constant 0 : i32
    %c0_i32_0 = arith.constant 0 : i32
    %c0_i32_1 = arith.constant 0 : i32
    return %c0_i32, %c0_i32_0 : i32, i32
  }
  func.func @transform_2(%arg0: i32) -> (i32, i32) {
    %c0_i32 = arith.constant 0 : i32
    %c0_i32_0 = arith.constant 0 : i32
    %c0_i32_1 = arith.constant 0 : i32
    return %c0_i32, %c0_i32_0 : i32, i32
  }
  func.func @transform_3(%arg0: i32) -> (i32, i32) {
    %c0_i32 = arith.constant 0 : i32
    %c0_i32_0 = arith.constant 0 : i32
    %c0_i32_1 = arith.constant 0 : i32
    return %c0_i32, %c0_i32_0 : i32, i32
  }
  func.func @transform_4(%arg0: i32) -> (i32, i32) {
    %c0_i32 = arith.constant 0 : i32
    %c0_i32_0 = arith.constant 0 : i32
    %c0_i32_1 = arith.constant 0 : i32
    return %c0_i32, %c0_i32_0 : i32, i32
  }
  func.func @transform_5(%arg0: i32) -> (i32, i32) {
    %c0_i32 = arith.constant 0 : i32
    %c0_i32_0 = arith.constant 0 : i32
    %c0_i32_1 = arith.constant 0 : i32
    return %c0_i32, %c0_i32_0 : i32, i32
  }
  func.func @transform_6(%arg0: i32) -> (i32, i32) {
    %c0_i32 = arith.constant 0 : i32
    %c0_i32_0 = arith.constant 0 : i32
    %c0_i32_1 = arith.constant 0 : i32
    return %c0_i32, %c0_i32_0 : i32, i32
  }
  func.func @transform_7(%arg0: i32) -> (i32, i32) {
    %c0_i32 = arith.constant 0 : i32
    %c0_i32_0 = arith.constant 0 : i32
    %c0_i32_1 = arith.constant 0 : i32
    return %c0_i32, %c0_i32_0 : i32, i32
  }
  func.func @transform_8(%arg0: i32) -> (i32, i32) {
    %c0_i32 = arith.constant 0 : i32
    %c0_i32_0 = arith.constant 0 : i32
    %c0_i32_1 = arith.constant 0 : i32
    return %c0_i32, %c0_i32_0 : i32, i32
  }
  func.func @transform_9(%arg0: i32) -> (i32, i32) {
    %c0_i32 = arith.constant 0 : i32
    %c0_i32_0 = arith.constant 0 : i32
    %c0_i32_1 = arith.constant 0 : i32
    return %c0_i32, %c0_i32_0 : i32, i32
  }
}

</mosaic_0001>

<llo_original>
// kernel: tpu_custom_call.1
$region0: #{tpu_custom_call.1}
  #allocation0 [shape = 'u32[]', space=smem, size = 0x4, offset = 0x4, fixed_abs, tag = 'smem constant byte address 0x4 - core index']
  #allocation1 [shape = 'u32[144,128]{1,0:T(1,128)}', space=vmem, size = 0x12000, scoped, tag = 'internal scratch']
  %s0 = inlined_call_operand.vmem [shape: f32[8,16], index: 0, kind: input, shape index: {}]
  %s1 = inlined_call_operand.vmem [shape: f32[16,16], index: 1, kind: input, shape index: {}]
  %s2 = inlined_call_operand.vmem [shape: f32[1,16], index: 2, kind: input, shape index: {}]
  %s3 = inlined_call_operand.vmem [shape: f32[8,128], index: 3, kind: input, shape index: {}]
  %s4 = inlined_call_operand.vmem [shape: f32[144,64], index: 4, kind: input, shape index: {}]
  %s5 = inlined_call_operand.vmem [shape: f32[1,64], index: 5, kind: input, shape index: {}]
  %s6 = inlined_call_operand.vmem [shape: f32[64,32], index: 6, kind: input, shape index: {}]
  %s7 = inlined_call_operand.vmem [shape: f32[1,32], index: 7, kind: input, shape index: {}]
  %s8 = inlined_call_operand.vmem [shape: f32[8,32], index: 8, kind: input, shape index: {}]
  %s9 = inlined_call_operand.hbm [shape: f32[8,96], index: 9, kind: output, shape index: {}]
  %s10 = sld [smem:[#allocation0]]
  $region46: #{tpu_custom_call.1} parent=0
    _
  %s12 = ssub.s32 1, %s10
  %s13 = scalar_select 0, %s12, %s10
  $region1: #{tpu_custom_call.1} parent=0
    #allocation2 [shape = 'u8[4096]{0}', space=vmem, size = 0x1000, scoped, tag = 'output window, operand 0, single buffered']
    #allocation3 [shape = 's32[1]{0}', space=sflag, size = 0x4, scoped, tag = 'scoped memory for tpu_custom_call.1']
    %14 = vsyncpa [#allocation3], 0
    // Predicated region
    $region2: #{tpu_custom_call.1} parent=1 // pred_check
      _
    $region3: #{tpu_custom_call.1} parent=1 // pred_check_branch
      %16 = sbr.rel (0) target = $region5
    $region4: #{tpu_custom_call.1} parent=1 // pred_region
      _
    $region5: #{tpu_custom_call.1} parent=1 // pred_fallthru
      _
    // Predicated region
    $region6: #{tpu_custom_call.1} parent=1 // pred_check
      _
    $region7: #{tpu_custom_call.1} parent=1 // pred_check_branch
      %18 = sbr.rel (0) target = $region9
    $region8: #{tpu_custom_call.1} parent=1 // pred_region
      _
    $region9: #{tpu_custom_call.1} parent=1 // pred_fallthru
      _
    // Predicated region
    $region10: #{tpu_custom_call.1} parent=1 // pred_check
      _
    $region11: #{tpu_custom_call.1} parent=1 // pred_check_branch
      %20 = sbr.rel (0) target = $region13
    $region12: #{tpu_custom_call.1} parent=1 // pred_region
      _
    $region13: #{tpu_custom_call.1} parent=1 // pred_fallthru
      _
    // Predicated region
    $region14: #{tpu_custom_call.1} parent=1 // pred_check
      _
    $region15: #{tpu_custom_call.1} parent=1 // pred_check_branch
      %22 = sbr.rel (0) target = $region17
    $region16: #{tpu_custom_call.1} parent=1 // pred_region
      _
    $region17: #{tpu_custom_call.1} parent=1 // pred_fallthru
      _
    // Predicated region
    $region18: #{tpu_custom_call.1} parent=1 // pred_check
      _
    $region19: #{tpu_custom_call.1} parent=1 // pred_check_branch
      %24 = sbr.rel (0) target = $region21
    $region20: #{tpu_custom_call.1} parent=1 // pred_region
      _
    $region21: #{tpu_custom_call.1} parent=1 // pred_fallthru
      _
    // Predicated region
    $region22: #{tpu_custom_call.1} parent=1 // pred_check
      _
    $region23: #{tpu_custom_call.1} parent=1 // pred_check_branch
      %26 = sbr.rel (0) target = $region25
    $region24: #{tpu_custom_call.1} parent=1 // pred_region
      _
    $region25: #{tpu_custom_call.1} parent=1 // pred_fallthru
      _
    // Predicated region
    $region26: #{tpu_custom_call.1} parent=1 // pred_check
      _
    $region27: #{tpu_custom_call.1} parent=1 // pred_check_branch
      %28 = sbr.rel (0) target = $region29
    $region28: #{tpu_custom_call.1} parent=1 // pred_region
      _
    $region29: #{tpu_custom_call.1} parent=1 // pred_fallthru
      _
    // Predicated region
    $region30: #{tpu_custom_call.1} parent=1 // pred_check
      _
    $region31: #{tpu_custom_call.1} parent=1 // pred_check_branch
      %30 = sbr.rel (0) target = $region33
    $region32: #{tpu_custom_call.1} parent=1 // pred_region
      _
    $region33: #{tpu_custom_call.1} parent=1 // pred_fallthru
      _
    // Predicated region
    $region34: #{tpu_custom_call.1} parent=1 // pred_check
      _
    $region35: #{tpu_custom_call.1} parent=1 // pred_check_branch
      %32 = sbr.rel (0) target = $region37
    $region36: #{tpu_custom_call.1} parent=1 // pred_region
      _
    $region37: #{tpu_custom_call.1} parent=1 // pred_fallthru
      _
    %v33 = vld [vmem:[%s0] sm:$0xff]
    %v34 = vld [vmem:[%s1] sm:$0xff]
    %v35 = vld [vmem:[%s1 + $0x8] sm:$0xff]
    %v36 = vld [vmem:[%s2] sm:$0x1]
    %v38 = vlaneseq
    %v39 = vshrl.u32 %v38, 7
    %v40 = vsub.s32 0, %v39
    %v41 = vrot.slane %v36, %v40
    %vm43 = vcmask 130048
    %v45 = vsel %vm43, %v33, 0
    %47 = vmatprep.subr.mxu0 0.0
    %48 = vmatpush1.msra.mxu0 0.0
    %49 = vmatprep.subr.mxu0 0.0
    %50 = vmatpush1.msra.mxu0 0.0
    %51 = vmatprep.subr.mxu0 0.0
    %52 = vmatpush1.msra.mxu0 0.0
    %53 = vmatprep.subr.mxu0 0.0
    %54 = vmatpush1.msra.mxu0 0.0
    %55 = vmatprep.subr.mxu0 0.0
    %56 = vmatpush1.msra.mxu0 0.0
    %57 = vmatprep.subr.mxu0 0.0
    %58 = vmatpush1.msra.mxu0 0.0
    %59 = vmatprep.subr.mxu0 0.0
    %60 = vmatpush1.msra.mxu0 0.0
    %61 = vmatprep.subr.mxu0 0.0
    %62 = vmatpush1.msra.mxu0 0.0
    %63 = vmatprep.subr.mxu0 0.0
    %64 = vmatpush1.msra.mxu0 0.0
    %65 = vmatprep.subr.mxu0 0.0
    %66 = vmatpush1.msra.mxu0 0.0
    %67 = vmatprep.subr.mxu0 0.0
    %68 = vmatpush1.msra.mxu0 0.0
    %69 = vmatprep.subr.mxu0 0.0
    %70 = vmatpush1.msra.mxu0 0.0
    %71 = vmatprep.subr.mxu0 0.0
    %72 = vmatpush1.msra.mxu0 0.0
    %73 = vmatprep.subr.mxu0 0.0
    %74 = vmatpush1.msra.mxu0 0.0
    %75 = vmatprep.subr.mxu0 0.0
    %76 = vmatpush1.msra.mxu0 %v35
    %77 = vmatprep.subr.mxu0 0.0
    %78 = vmatpush1.msra.mxu0 %v34
    %79 = vmatprep.subr.mxu0 0.0
    %80 = vmatpush2.msra.mxu0 0.0
    %81 = vmatprep.subr.mxu0 0.0
    %82 = vmatpush2.msra.mxu0 0.0
    %83 = vmatprep.subr.mxu0 0.0
    %84 = vmatpush2.msra.mxu0 0.0
    %85 = vmatprep.subr.mxu0 0.0
    %86 = vmatpush2.msra.mxu0 0.0
    %87 = vmatprep.subr.mxu0 0.0
    %88 = vmatpush2.msra.mxu0 0.0
    %89 = vmatprep.subr.mxu0 0.0
    %90 = vmatpush2.msra.mxu0 0.0
    %91 = vmatprep.subr.mxu0 0.0
    %92 = vmatpush2.msra.mxu0 0.0
    %93 = vmatprep.subr.mxu0 0.0
    %94 = vmatpush2.msra.mxu0 0.0
    %95 = vmatprep.subr.mxu0 0.0
    %96 = vmatpush2.msra.mxu0 0.0
    %97 = vmatprep.subr.mxu0 0.0
    %98 = vmatpush2.msra.mxu0 0.0
    %99 = vmatprep.subr.mxu0 0.0
    %100 = vmatpush2.msra.mxu0 0.0
    %101 = vmatprep.subr.mxu0 0.0
    %102 = vmatpush2.msra.mxu0 0.0
    %103 = vmatprep.subr.mxu0 0.0
    %104 = vmatpush2.msra.mxu0 0.0
    %105 = vmatprep.subr.mxu0 0.0
    %106 = vmatpush2.msra.mxu0 0.0
    %107 = vmatprep.subr.mxu0 0.0
    %108 = vmatpush2.msra.mxu0 0.0
    %109 = vmatprep.subr.mxu0 0.0
    %110 = vmatpush2.msra.mxu0 0.0
    %111 = vmatprep.mubr.f32.mxu0 0.0
    %112 = vmatmul.mubr.f32.gmra.mxu0 %v45
    %v113 = vpop.f32.mrf.mxu0
    %v114 = vadd.f32 %v41, %v113
    %v115 = vpop.f32.mrf.mxu0
    %116 = vdwg.mxu0
    %v117 = vld [vmem:[%s3] sm:$0xff]
    %v118 = vld [vmem:[%s4] sm:$0xff]
    %v119 = vld [vmem:[%s4 + $0x8] sm:$0xff]
    %v120 = vld [vmem:[%s4 + $0x10] sm:$0xff]
    %v121 = vld [vmem:[%s4 + $0x18] sm:$0xff]
    %v122 = vld [vmem:[%s4 + $0x20] sm:$0xff]
    %v123 = vld [vmem:[%s4 + $0x28] sm:$0xff]
    %v124 = vld [vmem:[%s4 + $0x30] sm:$0xff]
    %v125 = vld [vmem:[%s4 + $0x38] sm:$0xff]
    %v126 = vld [vmem:[%s4 + $0x40] sm:$0xff]
    %v127 = vld [vmem:[%s4 + $0x48] sm:$0xff]
    %v128 = vld [vmem:[%s4 + $0x50] sm:$0xff]
    %v129 = vld [vmem:[%s4 + $0x58] sm:$0xff]
    %v130 = vld [vmem:[%s4 + $0x60] sm:$0xff]
    %v131 = vld [vmem:[%s4 + $0x68] sm:$0xff]
    %v132 = vld [vmem:[%s4 + $0x70] sm:$0xff]
    %v133 = vld [vmem:[%s4 + $0x78] sm:$0xff]
    %v134 = vld [vmem:[%s4 + $0x80] sm:$0xff]
    %v135 = vld [vmem:[%s4 + $0x88] sm:$0xff]
    %v137 = vsel %vm43, %v114, 0
    %139 = vmatprep.subr.mxu0 0.0
    %140 = vmatpush1.msra.mxu0 0.0
    %141 = vmatprep.subr.mxu0 0.0
    %142 = vmatpush1.msra.mxu0 0.0
    %143 = vmatprep.subr.mxu0 0.0
    %144 = vmatpush1.msra.mxu0 0.0
    %145 = vmatprep.subr.mxu0 0.0
    %146 = vmatpush1.msra.mxu0 0.0
    %147 = vmatprep.subr.mxu0 0.0
    %148 = vmatpush1.msra.mxu0 0.0
    %149 = vmatprep.subr.mxu0 0.0
    %150 = vmatpush1.msra.mxu0 0.0
    %151 = vmatprep.subr.mxu0 0.0
    %152 = vmatpush1.msra.mxu0 0.0
    %153 = vmatprep.subr.mxu0 0.0
    %154 = vmatpush1.msra.mxu0 0.0
    %155 = vmatprep.subr.mxu0 0.0
    %156 = vmatpush1.msra.mxu0 0.0
    %157 = vmatprep.subr.mxu0 0.0
    %158 = vmatpush1.msra.mxu0 0.0
    %159 = vmatprep.subr.mxu0 0.0
    %160 = vmatpush1.msra.mxu0 0.0
    %161 = vmatprep.subr.mxu0 0.0
    %162 = vmatpush1.msra.mxu0 0.0
    %163 = vmatprep.subr.mxu0 0.0
    %164 = vmatpush1.msra.mxu0 0.0
    %165 = vmatprep.subr.mxu0 0.0
    %166 = vmatpush1.msra.mxu0 0.0
    %167 = vmatprep.subr.mxu0 0.0
    %168 = vmatpush1.msra.mxu0 %v135
    %169 = vmatprep.subr.mxu0 0.0
    %170 = vmatpush1.msra.mxu0 %v134
    %171 = vmatprep.subr.mxu0 0.0
    %172 = vmatpush2.msra.mxu0 0.0
    %173 = vmatprep.subr.mxu0 0.0
    %174 = vmatpush2.msra.mxu0 0.0
    %175 = vmatprep.subr.mxu0 0.0
    %176 = vmatpush2.msra.mxu0 0.0
    %177 = vmatprep.subr.mxu0 0.0
    %178 = vmatpush2.msra.mxu0 0.0
    %179 = vmatprep.subr.mxu0 0.0
    %180 = vmatpush2.msra.mxu0 0.0
    %181 = vmatprep.subr.mxu0 0.0
    %182 = vmatpush2.msra.mxu0 0.0
    %183 = vmatprep.subr.mxu0 0.0
    %184 = vmatpush2.msra.mxu0 0.0
    %185 = vmatprep.subr.mxu0 0.0
    %186 = vmatpush2.msra.mxu0 0.0
    %187 = vmatprep.subr.mxu0 0.0
    %188 = vmatpush2.msra.mxu0 0.0
    %189 = vmatprep.subr.mxu0 0.0
    %190 = vmatpush2.msra.mxu0 0.0
    %191 = vmatprep.subr.mxu0 0.0
    %192 = vmatpush2.msra.mxu0 0.0
    %193 = vmatprep.subr.mxu0 0.0
    %194 = vmatpush2.msra.mxu0 0.0
    %195 = vmatprep.subr.mxu0 0.0
    %196 = vmatpush2.msra.mxu0 0.0
    %197 = vmatprep.subr.mxu0 0.0
    %198 = vmatpush2.msra.mxu0 0.0
    %199 = vmatprep.subr.mxu0 0.0
    %200 = vmatpush2.msra.mxu0 0.0
    %201 = vmatprep.subr.mxu0 0.0
    %202 = vmatpush2.msra.mxu0 0.0
    %203 = vmatprep.mubr.f32.mxu0 0.0
    %204 = vmatmul.mubr.f32.gmra.mxu0 %v137
    %v205 = vpop.f32.mrf.mxu0
    %v206 = vadd.f32 0.0, %v205
    %v207 = vpop.f32.mrf.mxu0
    %208 = vdwg.mxu0
    %209 = vmatprep.subr.mxu0 0.0
    %210 = vmatpush1.msra.mxu0 %v133
    %211 = vmatprep.subr.mxu0 0.0
    %212 = vmatpush1.msra.mxu0 %v132
    %213 = vmatprep.subr.mxu0 0.0
    %214 = vmatpush1.msra.mxu0 %v131
    %215 = vmatprep.subr.mxu0 0.0
    %216 = vmatpush1.msra.mxu0 %v130
    %217 = vmatprep.subr.mxu0 0.0
    %218 = vmatpush1.msra.mxu0 %v129
    %219 = vmatprep.subr.mxu0 0.0
    %220 = vmatpush1.msra.mxu0 %v128
    %221 = vmatprep.subr.mxu0 0.0
    %222 = vmatpush1.msra.mxu0 %v127
    %223 = vmatprep.subr.mxu0 0.0
    %224 = vmatpush1.msra.mxu0 %v126
    %225 = vmatprep.subr.mxu0 0.0
    %226 = vmatpush1.msra.mxu0 %v125
    %227 = vmatprep.subr.mxu0 0.0
    %228 = vmatpush1.msra.mxu0 %v124
    %229 = vmatprep.subr.mxu0 0.0
    %230 = vmatpush1.msra.mxu0 %v123
    %231 = vmatprep.subr.mxu0 0.0
    %232 = vmatpush1.msra.mxu0 %v122
    %233 = vmatprep.subr.mxu0 0.0
    %234 = vmatpush1.msra.mxu0 %v121
    %235 = vmatprep.subr.mxu0 0.0
    %236 = vmatpush1.msra.mxu0 %v120
    %237 = vmatprep.subr.mxu0 0.0
    %238 = vmatpush1.msra.mxu0 %v119
    %239 = vmatprep.subr.mxu0 0.0
    %240 = vmatpush1.msra.mxu0 %v118
    %241 = vmatprep.subr.mxu0 0.0
    %242 = vmatpush2.msra.mxu0 0.0
    %243 = vmatprep.subr.mxu0 0.0
    %244 = vmatpush2.msra.mxu0 0.0
    %245 = vmatprep.subr.mxu0 0.0
    %246 = vmatpush2.msra.mxu0 0.0
    %247 = vmatprep.subr.mxu0 0.0
    %248 = vmatpush2.msra.mxu0 0.0
    %249 = vmatprep.subr.mxu0 0.0
    %250 = vmatpush2.msra.mxu0 0.0
    %251 = vmatprep.subr.mxu0 0.0
    %252 = vmatpush2.msra.mxu0 0.0
    %253 = vmatprep.subr.mxu0 0.0
    %254 = vmatpush2.msra.mxu0 0.0
    %255 = vmatprep.subr.mxu0 0.0
    %256 = vmatpush2.msra.mxu0 0.0
    %257 = vmatprep.subr.mxu0 0.0
    %258 = vmatpush2.msra.mxu0 0.0
    %259 = vmatprep.subr.mxu0 0.0
    %260 = vmatpush2.msra.mxu0 0.0
    %261 = vmatprep.subr.mxu0 0.0
    %262 = vmatpush2.msra.mxu0 0.0
    %263 = vmatprep.subr.mxu0 0.0
    %264 = vmatpush2.msra.mxu0 0.0
    %265 = vmatprep.subr.mxu0 0.0
    %266 = vmatpush2.msra.mxu0 0.0
    %267 = vmatprep.subr.mxu0 0.0
    %268 = vmatpush2.msra.mxu0 0.0
    %269 = vmatprep.subr.mxu0 0.0
    %270 = vmatpush2.msra.mxu0 0.0
    %271 = vmatprep.subr.mxu0 0.0
    %272 = vmatpush2.msra.mxu0 0.0
    %273 = vmatprep.mubr.f32.mxu0 0.0
    %274 = vmatmul.mubr.f32.gmra.mxu0 %v117
    %v275 = vpop.f32.mrf.mxu0
    %v276 = vadd.f32 %v206, %v275
    %v277 = vpop.f32.mrf.mxu0
    %278 = vdwg.mxu0
    %v279 = vld [vmem:[%s5] sm:$0x1]
    %v281 = vlaneseq
    %v282 = vshrl.u32 %v281, 7
    %v283 = vsub.s32 0, %v282
    %v284 = vrot.slane %v279, %v283
    %v286 = vadd.f32 %v276, %v284
    %v287 = vtanh.pop %v286
    %v288 = vld [vmem:[%s6] sm:$0xff]
    %v289 = vld [vmem:[%s6 + $0x8] sm:$0xff]
    %v290 = vld [vmem:[%s6 + $0x10] sm:$0xff]
    %v291 = vld [vmem:[%s6 + $0x18] sm:$0xff]
    %v292 = vld [vmem:[%s6 + $0x20] sm:$0xff]
    %v293 = vld [vmem:[%s6 + $0x28] sm:$0xff]
    %v294 = vld [vmem:[%s6 + $0x30] sm:$0xff]
    %v295 = vld [vmem:[%s6 + $0x38] sm:$0xff]
    %v296 = vld [vmem:[%s7] sm:$0x1]
    %v298 = vlaneseq
    %v299 = vshrl.u32 %v298, 7
    %v300 = vsub.s32 0, %v299
    %v301 = vrot.slane %v296, %v300
    %vm303 = vcmask 523264
    %v305 = vsel %vm303, %v287, 0
    %307 = vmatprep.subr.mxu0 0.0
    %308 = vmatpush1.msra.mxu0 0.0
    %309 = vmatprep.subr.mxu0 0.0
    %310 = vmatpush1.msra.mxu0 0.0
    %311 = vmatprep.subr.mxu0 0.0
    %312 = vmatpush1.msra.mxu0 0.0
    %313 = vmatprep.subr.mxu0 0.0
    %314 = vmatpush1.msra.mxu0 0.0
    %315 = vmatprep.subr.mxu0 0.0
    %316 = vmatpush1.msra.mxu0 0.0
    %317 = vmatprep.subr.mxu0 0.0
    %318 = vmatpush1.msra.mxu0 0.0
    %319 = vmatprep.subr.mxu0 0.0
    %320 = vmatpush1.msra.mxu0 0.0
    %321 = vmatprep.subr.mxu0 0.0
    %322 = vmatpush1.msra.mxu0 0.0
    %323 = vmatprep.subr.mxu0 0.0
    %324 = vmatpush1.msra.mxu0 %v295
    %325 = vmatprep.subr.mxu0 0.0
    %326 = vmatpush1.msra.mxu0 %v294
    %327 = vmatprep.subr.mxu0 0.0
    %328 = vmatpush1.msra.mxu0 %v293
    %329 = vmatprep.subr.mxu0 0.0
    %330 = vmatpush1.msra.mxu0 %v292
    %331 = vmatprep.subr.mxu0 0.0
    %332 = vmatpush1.msra.mxu0 %v291
    %333 = vmatprep.subr.mxu0 0.0
    %334 = vmatpush1.msra.mxu0 %v290
    %335 = vmatprep.subr.mxu0 0.0
    %336 = vmatpush1.msra.mxu0 %v289
    %337 = vmatprep.subr.mxu0 0.0
    %338 = vmatpush1.msra.mxu0 %v288
    %339 = vmatprep.subr.mxu0 0.0
    %340 = vmatpush2.msra.mxu0 0.0
    %341 = vmatprep.subr.mxu0 0.0
    %342 = vmatpush2.msra.mxu0 0.0
    %343 = vmatprep.subr.mxu0 0.0
    %344 = vmatpush2.msra.mxu0 0.0
    %345 = vmatprep.subr.mxu0 0.0
    %346 = vmatpush2.msra.mxu0 0.0
    %347 = vmatprep.subr.mxu0 0.0
    %348 = vmatpush2.msra.mxu0 0.0
    %349 = vmatprep.subr.mxu0 0.0
    %350 = vmatpush2.msra.mxu0 0.0
    %351 = vmatprep.subr.mxu0 0.0
    %352 = vmatpush2.msra.mxu0 0.0
    %353 = vmatprep.subr.mxu0 0.0
    %354 = vmatpush2.msra.mxu0 0.0
    %355 = vmatprep.subr.mxu0 0.0
    %356 = vmatpush2.msra.mxu0 0.0
    %357 = vmatprep.subr.mxu0 0.0
    %358 = vmatpush2.msra.mxu0 0.0
    %359 = vmatprep.subr.mxu0 0.0
    %360 = vmatpush2.msra.mxu0 0.0
    %361 = vmatprep.subr.mxu0 0.0
    %362 = vmatpush2.msra.mxu0 0.0
    %363 = vmatprep.subr.mxu0 0.0
    %364 = vmatpush2.msra.mxu0 0.0
    %365 = vmatprep.subr.mxu0 0.0
    %366 = vmatpush2.msra.mxu0 0.0
    %367 = vmatprep.subr.mxu0 0.0
    %368 = vmatpush2.msra.mxu0 0.0
    %369 = vmatprep.subr.mxu0 0.0
    %370 = vmatpush2.msra.mxu0 0.0
    %371 = vmatprep.mubr.f32.mxu0 0.0
    %372 = vmatmul.mubr.f32.gmra.mxu0 %v305
    %v373 = vpop.f32.mrf.mxu0
    %v374 = vadd.f32 %v301, %v373
    %v375 = vpop.f32.mrf.mxu0
    %376 = vdwg.mxu0
    %v377 = vtanh.pop %v374
    %v378 = vld [vmem:[%s8] sm:$0xff]
    %v379 = vmul.f32 %v377, %v377
    %vm380 = vcmask 261120
    %v381 = vsel %vm380, %v379, 0.0
    %382 = vadd.xlane.f32.xlu0 %v381
    %v383 = vpop.xlane.xlu0 %382
    %v384 = vmul.f32 %v383, 2.0
    %v385 = vmul.f32 %v378, %v378
    %v386 = vsel %vm380, %v385, 0.0
    %387 = vadd.xlane.f32.xlu0 %v386
    %v388 = vpop.xlane.xlu0 %387
    %v389 = vadd.f32 %v384, %v388
    %v390 = vrsqrt.pop %v389
    %392 = vrot.lane.b32.xlu0 %v377, 32
    %v393 = vpop.permute.xlu0 %392
    %396 = vrot.lane.b32.xlu0 %v378, 64
    %v397 = vpop.permute.xlu0 %396
    %v399 = vsel %vm380, %v377, %v393
    %v400 = vsel %vm303, %v399, %v397
    %v401 = vmul.f32 %v400, %v390
    %vm402 = vcmask 785408
    %403 = vst.msk [vmem:[#allocation2] sm:$0xff] %vm402, %v401
    // Predicated region
    $region38: #{tpu_custom_call.1} parent=1 // pred_check
      _
    $region39: #{tpu_custom_call.1} parent=1 // pred_check_branch
      %405 = sbr.rel (0) target = $region41
    $region40: #{tpu_custom_call.1} parent=1 // pred_region
      %s407 = ssub.s32 128, 128
      %408 = vsyncadd [#allocation3], %s407
      %s410 = sshll.u32 [#allocation2], 4
      %s411 = int_to_ptr.vmem [resolvable:$true] %s410
      %413 = dma.vmem_to_hbm [thread:$0]  %s411, 128, %s9, [#allocation3]
    $region41: #{tpu_custom_call.1} parent=1 // pred_fallthru
      _
    // Predicated region
    $region42: #{tpu_custom_call.1} parent=1 // pred_check
      _
    $region43: #{tpu_custom_call.1} parent=1 // pred_check_branch
      %415 = sbr.rel (0) target = $region45
    $region44: #{tpu_custom_call.1} parent=1 // pred_region
      %416 = dma.done [#allocation3], 128
    $region45: #{tpu_custom_call.1} parent=1 // pred_fallthru
      _
    %417 = vsyncpa [#allocation3], 1

</llo_original>
